<compile_context>
chip_gen: v6e
topology: v6e:2x2x1
jax: 0.10.0
libtpu: 0.0.40
codegen_flags: <defaults>
</compile_context>

<pallas_src>
import functools

import jax
import jax.numpy as jnp
from jax.experimental import pallas as pl
from jax.experimental.pallas import tpu as pltpu

TM_MAX = 256      # rows per M tile (v7x-safe; fine on v5e/v6e)
TK_MAX = 1024     # columns per K (reduction) tile


def _round_up(x, m):
    return (x + m - 1) // m * m


def _pad2(x, rows, cols):
    r, c = x.shape
    if r == rows and c == cols:
        return x
    return jnp.pad(x, ((0, rows - r), (0, cols - c)))


# ----------------------------------------------------------------------------
# Kernel 1: out = [relu](x @ w + bias)  (K-tiled f32 accumulator, bf16 MXU)
# Used for the expand conv (BN folded into w) and the shrink head.
# ----------------------------------------------------------------------------
def _matmul_bias_act_kernel(x_ref, w_ref, b_ref, o_ref, acc_ref, *,
                            n_k, apply_relu):
    kk = pl.program_id(1)

    @pl.when(kk == 0)
    def _():
        acc_ref[...] = jnp.zeros_like(acc_ref)

    acc_ref[...] += jnp.dot(x_ref[...], w_ref[...],
                            preferred_element_type=jnp.float32)

    @pl.when(kk == n_k - 1)
    def _():
        y = acc_ref[...] + b_ref[...]
        if apply_relu:
            y = jnp.maximum(y, 0.0)
        o_ref[...] = y.astype(o_ref.dtype)


def matmul_bias_act(x, w, bias, *, apply_relu, out_dtype=jnp.bfloat16):
    """[relu](x @ w + bias), M/K tiled; pads M/K/N to TPU-friendly sizes."""
    M, K = x.shape
    Kw, N = w.shape
    assert K == Kw, (K, Kw)

    Np = _round_up(N, 128)                 # lane-dense output (N=51 -> 128)
    Kp = _round_up(K, 128)                 # aligned MXU K (K=102 -> 128)
    tk = min(TK_MAX, Kp)
    Kp = _round_up(Kp, tk)
    tm = min(TM_MAX, _round_up(M, 8))
    Mp = _round_up(M, tm)
    n_k = Kp // tk

    xp = _pad2(x, Mp, Kp).astype(jnp.bfloat16)
    wp = _pad2(w.astype(jnp.float32), Kp, Np).astype(jnp.bfloat16)
    bp = _pad2(bias.reshape(1, N).astype(jnp.float32), 1, Np)

    out = pl.pallas_call(
        functools.partial(_matmul_bias_act_kernel, n_k=n_k,
                          apply_relu=apply_relu),
        out_shape=jax.ShapeDtypeStruct((Mp, Np), out_dtype),
        grid=(Mp // tm, n_k),
        in_specs=[
            pl.BlockSpec((tm, tk), lambda m, kk: (m, kk)),
            pl.BlockSpec((tk, Np), lambda m, kk: (kk, 0)),
            pl.BlockSpec((1, Np), lambda m, kk: (0, 0)),
        ],
        out_specs=pl.BlockSpec((tm, Np), lambda m, kk: (m, 0)),
        scratch_shapes=[pltpu.VMEM((tm, Np), jnp.float32)],
        compiler_params=pltpu.CompilerParams(
            dimension_semantics=("parallel", "arbitrary"),
            vmem_limit_bytes=32 * 1024 * 1024),
    )(xp, wp, bp)
    return out[:M, :N]


# ----------------------------------------------------------------------------
# Kernel 2: fused residual block
#   h = relu(patches @ w_a + b_a)           (strided conv_a, BN_a folded)
#   y = relu(h @ w_b + b_b) + residual      (1x1 conv_b, BN_b folded)
# The residual row is a C-wide slice of the im2col patches tile (time tap
# k//2), so it never leaves VMEM; h stays in the f32 accumulator scratch.
# ----------------------------------------------------------------------------
def _resblock_kernel(p_ref, wa_ref, ba_ref, wb_ref, bb_ref, o_ref,
                     acc_ref, res_ref, *, n_k, res_k_idx, res_off, C):
    kk = pl.program_id(1)

    @pl.when(kk == 0)
    def _():
        acc_ref[...] = jnp.zeros_like(acc_ref)

    acc_ref[...] += jnp.dot(p_ref[...], wa_ref[...],
                            preferred_element_type=jnp.float32)

    @pl.when(kk == res_k_idx)
    def _():
        res_ref[...] = p_ref[:, res_off:res_off + C].astype(jnp.float32)

    @pl.when(kk == n_k - 1)
    def _():
        h = jnp.maximum(acc_ref[...] + ba_ref[...], 0.0)         # conv_a epilogue
        y = jnp.dot(h.astype(wb_ref.dtype), wb_ref[...],         # 1x1 conv_b
                    preferred_element_type=jnp.float32) + bb_ref[...]
        y = jnp.maximum(y, 0.0) + res_ref[...]                   # ReLU + residual
        o_ref[...] = y.astype(o_ref.dtype)


def residual_block(patches, w_a, b_a, w_b, b_b, *, k, C):
    M, K = patches.shape
    assert K == k * C and C % 128 == 0, (K, k, C)

    tm = min(TM_MAX, _round_up(M, 8))
    Mp = _round_up(M, tm)
    # K tile is a multiple of C so the residual row lives inside one K tile.
    cpt = max(1, TK_MAX // C)
    c_per_tile = max(d for d in range(1, k + 1) if k % d == 0 and d <= cpt)
    tk = C * c_per_tile
    n_k = K // tk
    res_k_idx = ((k // 2) * C) // tk
    res_off = ((k // 2) * C) % tk

    pp = _pad2(patches, Mp, K).astype(jnp.bfloat16)
    wa = w_a.astype(jnp.bfloat16)
    wb = w_b.astype(jnp.bfloat16)
    ba = b_a.reshape(1, C).astype(jnp.float32)
    bb = b_b.reshape(1, C).astype(jnp.float32)

    out = pl.pallas_call(
        functools.partial(_resblock_kernel, n_k=n_k, res_k_idx=res_k_idx,
                          res_off=res_off, C=C),
        out_shape=jax.ShapeDtypeStruct((Mp, C), jnp.bfloat16),
        grid=(Mp // tm, n_k),
        in_specs=[
            pl.BlockSpec((tm, tk), lambda m, kk: (m, kk)),
            pl.BlockSpec((tk, C), lambda m, kk: (kk, 0)),
            pl.BlockSpec((1, C), lambda m, kk: (0, 0)),
            pl.BlockSpec((C, C), lambda m, kk: (0, 0)),
            pl.BlockSpec((1, C), lambda m, kk: (0, 0)),
        ],
        out_specs=pl.BlockSpec((tm, C), lambda m, kk: (m, 0)),
        scratch_shapes=[pltpu.VMEM((tm, C), jnp.float32),   # conv_a accumulator
                        pltpu.VMEM((tm, C), jnp.float32)],  # residual row
        compiler_params=pltpu.CompilerParams(
            dimension_semantics=("parallel", "arbitrary"),
            vmem_limit_bytes=32 * 1024 * 1024),
    )(pp, wa, ba, wb, bb)
    return out[:M]


# ----------------------------------------------------------------------------
# Parameter setup (deterministic, in-script)
# ----------------------------------------------------------------------------
def init_params(key, filter_widths, channels, in_channels=34, out_channels=17 * 3):
    keys = iter(jax.random.split(key, 128))

    def conv_w(cout, cin, k):
        return 0.05 * jax.random.normal(next(keys), (cout, cin, k), jnp.float32)

    def bn(c):
        return dict(
            gamma=1.0 + 0.1 * jax.random.normal(next(keys), (c,), jnp.float32),
            beta=0.1 * jax.random.normal(next(keys), (c,), jnp.float32),
            mean=0.1 * jax.random.normal(next(keys), (c,), jnp.float32),
            var=1.0 + 0.1 * jnp.abs(jax.random.normal(next(keys), (c,), jnp.float32)),
        )

    params = dict(
        expand_conv_w=conv_w(channels, in_channels, filter_widths[0]),
        expand_bn=bn(channels),
        blocks=[],
        shrink_w=conv_w(out_channels, channels, 1),
        shrink_b=0.05 * jax.random.normal(next(keys), (out_channels,), jnp.float32),
    )
    for k in filter_widths[1:]:
        params["blocks"].append(dict(
            conv_a_w=conv_w(channels, channels, k),
            bn_a=bn(channels),
            conv_b_w=conv_w(channels, channels, 1),
            bn_b=bn(channels),
        ))
    return params


def _bn_fold(p, eps=1e-5):
    scale = p["gamma"] / jnp.sqrt(p["var"] + eps)
    bias = p["beta"] - p["mean"] * scale
    return scale, bias


def _conv_w_to_mat(w):
    # PyTorch Conv1d weight (Cout, Cin, K) -> (K*Cin, Cout): time-tap major,
    # channel minor, matching the channels-last im2col flatten order.
    cout, cin, k = w.shape
    return jnp.transpose(w, (2, 1, 0)).reshape(k * cin, cout)


# ----------------------------------------------------------------------------
# Pallas forward (mirrors MyVideoTrainModel.forward, inference semantics)
# ----------------------------------------------------------------------------
def pallas_forward(params, pos_3d, pos_2d, bone_angle, filter_widths):
    B, T = pos_2d.shape[:2]
    x = jnp.concatenate([
        pos_3d.reshape(B, T, -1),
        pos_2d.reshape(B, T, -1),
        bone_angle.reshape(B, T, -1),
    ], axis=-1).astype(jnp.bfloat16)                       # (B, T, 34) channels-last
    C = params["expand_conv_w"].shape[0]

    # expand_conv + expand_bn + relu (+dropout identity)
    k0 = filter_widths[0]
    Tout = (T - k0) // k0 + 1
    patches = x[:, :Tout * k0, :].reshape(B * Tout, k0 * x.shape[-1])
    scale_e, bias_e = _bn_fold(params["expand_bn"])
    w_e = _conv_w_to_mat(params["expand_conv_w"]) * scale_e[None, :]
    x = matmul_bias_act(patches, w_e, bias_e, apply_relu=True,
                        out_dtype=jnp.bfloat16).reshape(B, Tout, C)

    # fused residual blocks (conv_a + conv_b + residual in one pallas_call)
    for i, k in enumerate(filter_widths[1:]):
        blk = params["blocks"][i]
        Bc, Tc, _ = x.shape
        Tout = (Tc - k) // k + 1
        patches = x[:, :Tout * k, :].reshape(Bc * Tout, k * C)
        sa, ba = _bn_fold(blk["bn_a"])
        sb, bb = _bn_fold(blk["bn_b"])
        wa = _conv_w_to_mat(blk["conv_a_w"]) * sa[None, :]
        wb = _conv_w_to_mat(blk["conv_b_w"]) * sb[None, :]
        x = residual_block(patches, wa, ba, wb, bb, k=k, C=C).reshape(Bc, Tout, C)

    # shrink head: 1x1 conv with bias (N padded 51->128 inside, lane-dense)
    B2, Tf, _ = x.shape
    flat = x.reshape(B2 * Tf, C)
    w_s = _conv_w_to_mat(params["shrink_w"])               # (C, 51)
    out = matmul_bias_act(flat, w_s, params["shrink_b"],
                          apply_relu=False, out_dtype=jnp.float32)
    # replicate torch's (B, 51, Tf).contiguous().view(-1, 17, 3)
    out = out.reshape(B2, Tf, -1).transpose(0, 2, 1).reshape(-1, 17, 3)
    return out


# ----------------------------------------------------------------------------
# Pure-JAX reference (NCW, f32 lax conv) to validate the Pallas translation
# ----------------------------------------------------------------------------
def _ref_conv1d(x, w, stride, bias=None):
    out = jax.lax.conv_general_dilated(
        x, w, window_strides=(stride,), padding="VALID",
        dimension_numbers=("NCH", "OIH", "NCH"),
        precision=jax.lax.Precision.HIGHEST)
    if bias is not None:
        out = out + bias[None, :, None]
    return out


def reference_forward(params, pos_3d, pos_2d, bone_angle, filter_widths):
    B, T = pos_2d.shape[:2]
    x = jnp.concatenate([
        pos_3d.reshape(B, T, -1),
        pos_2d.reshape(B, T, -1),
        bone_angle.reshape(B, T, -1),
    ], axis=-1).astype(jnp.float32)
    x = jnp.transpose(x, (0, 2, 1))                        # (B, Cin, T)

    def bn(x, p):
        scale, bias = _bn_fold(p)
        return x * scale[None, :, None] + bias[None, :, None]

    x = jax.nn.relu(bn(_ref_conv1d(x, params["expand_conv_w"], filter_widths[0]),
                       params["expand_bn"]))
    for i, k in enumerate(filter_widths[1:]):
        blk = params["blocks"][i]
        res = x[:, :, k // 2 :: k]
        x = jax.nn.relu(bn(_ref_conv1d(x, blk["conv_a_w"], k), blk["bn_a"]))
        x = res + jax.nn.relu(bn(_ref_conv1d(x, blk["conv_b_w"], 1), blk["bn_b"]))
    out = _ref_conv1d(x, params["shrink_w"], 1, params["shrink_b"])  # (B, 51, Tf)
    return out.reshape(-1, 17, 3)


# ----------------------------------------------------------------------------
if __name__ == "__main__":
    filter_widths = [3, 3]
    channels = 128           # model default is 1024; small deterministic example
    B, T = 2, 9              # T = 3*3 so the final temporal length is 1

    key = jax.random.PRNGKey(0)
    kp, k3d, k2d, kba = jax.random.split(key, 4)
    params = init_params(kp, filter_widths, channels)

    # flattened feature dims must sum to in_channels = 17*2 = 34
    pos_3d = jax.random.normal(k3d, (B, T, 4, 3), jnp.float32)      # 12
    pos_2d = jax.random.normal(k2d, (B, T, 8, 2), jnp.float32)      # 16
    bone_angle = jax.random.normal(kba, (B, T, 6, 1), jnp.float32)  # 6

    fwd = jax.jit(functools.partial(pallas_forward,
                                    filter_widths=tuple(filter_widths)))
    out = fwd(params, pos_3d, pos_2d, bone_angle)
    out = jax.block_until_ready(out)

    ref = reference_forward(params, pos_3d, pos_2d, bone_angle, filter_widths)
    assert out.shape == (B * 1, 17, 3), out.shape
    # bf16 MXU inputs vs f32 HIGHEST reference -> loosened tolerance.
    assert jnp.allclose(out.astype(jnp.float32), ref, atol=5e-2, rtol=5e-2), float(
        jnp.max(jnp.abs(out.astype(jnp.float32) - ref)))

    print("KERNEL_OK")
</pallas_src>

<mosaic_0001>
module attributes {stable_mosaic.version = 11 : i64} {
  func.func @_matmul_bias_act_kernel(%arg0: i32, %arg1: i32, %arg2: memref<8x128xbf16, #tpu.memory_space<vmem>>, %arg3: memref<128x128xbf16, #tpu.memory_space<vmem>>, %arg4: memref<1x128xf32, #tpu.memory_space<vmem>>, %arg5: memref<8x128xbf16, #tpu.memory_space<vmem>>, %arg6: memref<8x128xf32, #tpu.memory_space<vmem>>) attributes {dimension_semantics = [#tpu.dimension_semantics<parallel>, #tpu.dimension_semantics<arbitrary>], iteration_bounds = array<i64: 1, 1>, scalar_prefetch = 0 : i64, scratch_operands = 1 : i64, tpu.core_type = #tpu.core_type<tc>, window_params = [{transform_indices = @transform_0, window_bounds = array<i64: 8, 128>}, {transform_indices = @transform_1, window_bounds = array<i64: 128, 128>}, {pipeline_mode = #tpu.pipeline_mode<synchronous>, transform_indices = @transform_2, window_bounds = array<i64: 1, 128>}, {transform_indices = @transform_3, window_bounds = array<i64: 8, 128>}]} {
    %c0_i32 = arith.constant 0 : i32
    %0 = arith.cmpi eq, %arg1, %c0_i32 : i32
    %1 = arith.extui %0 : i1 to i32
    %c0_i32_0 = arith.constant 0 : i32
    %2 = arith.cmpi ne, %1, %c0_i32_0 : i32
    scf.if %2 {
      %cst_10 = arith.constant 0.000000e+00 : f32
      %12 = vector.broadcast %cst_10 : f32 to vector<8x128xf32>
      %c0_11 = arith.constant 0 : index
      %c0_12 = arith.constant 0 : index
      %13 = vector.load %arg6[%c0_11, %c0_12] : memref<8x128xf32, #tpu.memory_space<vmem>>, vector<8x128xf32>
      tpu.vector_store %arg6[%c0_11, %c0_12], %12 {strides = array<i32>} : memref<8x128xf32, #tpu.memory_space<vmem>>, vector<8x128xf32>,
    } else {
    }
    %c0 = arith.constant 0 : index
    %c0_1 = arith.constant 0 : index
    %3 = vector.load %arg6[%c0, %c0_1] : memref<8x128xf32, #tpu.memory_space<vmem>>, vector<8x128xf32>
    %c0_2 = arith.constant 0 : index
    %c0_3 = arith.constant 0 : index
    %4 = vector.load %arg2[%c0_2, %c0_3] : memref<8x128xbf16, #tpu.memory_space<vmem>>, vector<8x128xbf16>
    %c0_4 = arith.constant 0 : index
    %c0_5 = arith.constant 0 : index
    %5 = vector.load %arg3[%c0_4, %c0_5] : memref<128x128xbf16, #tpu.memory_space<vmem>>, vector<128x128xbf16>
    %cst = arith.constant dense<0.000000e+00> : vector<8x128xf32>
    %6 = tpu.matmul %4, %5, %cst {dimension_numbers = #tpu.dot_dimension_numbers<[1], [0], [0], [1], [0, 0, 1, 1], [], []>} : vector<8x128xbf16>, vector<128x128xbf16>, vector<8x128xf32> -> vector<8x128xf32>
    %7 = arith.addf %3, %6 : vector<8x128xf32>
    %c0_6 = arith.constant 0 : index
    %c0_7 = arith.constant 0 : index
    %8 = vector.load %arg6[%c0_6, %c0_7] : memref<8x128xf32, #tpu.memory_space<vmem>>, vector<8x128xf32>
    tpu.vector_store %arg6[%c0_6, %c0_7], %7 {strides = array<i32>} : memref<8x128xf32, #tpu.memory_space<vmem>>, vector<8x128xf32>,
    %c0_i32_8 = arith.constant 0 : i32
    %9 = arith.cmpi eq, %arg1, %c0_i32_8 : i32
    %10 = arith.extui %9 : i1 to i32
    %c0_i32_9 = arith.constant 0 : i32
    %11 = arith.cmpi ne, %10, %c0_i32_9 : i32
    scf.if %11 {
      %c0_10 = arith.constant 0 : index
      %c0_11 = arith.constant 0 : index
      %12 = vector.load %arg6[%c0_10, %c0_11] : memref<8x128xf32, #tpu.memory_space<vmem>>, vector<8x128xf32>
      %c0_12 = arith.constant 0 : index
      %c0_13 = arith.constant 0 : index
      %13 = vector.load %arg4[%c0_12, %c0_13] : memref<1x128xf32, #tpu.memory_space<vmem>>, vector<1x128xf32>
      %14 = vector.broadcast %13 : vector<1x128xf32> to vector<8x128xf32>
      %15 = arith.addf %12, %14 : vector<8x128xf32>
      %cst_14 = arith.constant 0.000000e+00 : f32
      %16 = vector.broadcast %cst_14 : f32 to vector<8x128xf32>
      %17 = arith.maximumf %15, %16 : vector<8x128xf32>
      %18 = arith.truncf %17 : vector<8x128xf32> to vector<8x128xbf16>
      %c0_15 = arith.constant 0 : index
      %c0_16 = arith.constant 0 : index
      %19 = vector.load %arg5[%c0_15, %c0_16] : memref<8x128xbf16, #tpu.memory_space<vmem>>, vector<8x128xbf16>
      tpu.vector_store %arg5[%c0_15, %c0_16], %18 {strides = array<i32>} : memref<8x128xbf16, #tpu.memory_space<vmem>>, vector<8x128xbf16>,
    } else {
    }
    return
  }
  func.func @transform_0(%arg0: i32, %arg1: i32) -> (i32, i32) {
    %c0_i32 = arith.constant 0 : i32
    return %arg0, %arg1 : i32, i32
  }
  func.func @transform_1(%arg0: i32, %arg1: i32) -> (i32, i32) {
    %c0_i32 = arith.constant 0 : i32
    %c0_i32_0 = arith.constant 0 : i32
    return %arg1, %c0_i32 : i32, i32
  }
  func.func @transform_2(%arg0: i32, %arg1: i32) -> (i32, i32) {
    %c0_i32 = arith.constant 0 : i32
    %c0_i32_0 = arith.constant 0 : i32
    %c0_i32_1 = arith.constant 0 : i32
    return %c0_i32, %c0_i32_0 : i32, i32
  }
  func.func @transform_3(%arg0: i32, %arg1: i32) -> (i32, i32) {
    %c0_i32 = arith.constant 0 : i32
    %c0_i32_0 = arith.constant 0 : i32
    return %arg0, %c0_i32 : i32, i32
  }
}

module attributes {stable_mosaic.version = 11 : i64} {
  func.func @_resblock_kernel(%arg0: i32, %arg1: i32, %arg2: memref<8x384xbf16, #tpu.memory_space<vmem>>, %arg3: memref<384x128xbf16, #tpu.memory_space<vmem>>, %arg4: memref<1x128xf32, #tpu.memory_space<vmem>>, %arg5: memref<128x128xbf16, #tpu.memory_space<vmem>>, %arg6: memref<1x128xf32, #tpu.memory_space<vmem>>, %arg7: memref<8x128xbf16, #tpu.memory_space<vmem>>, %arg8: memref<8x128xf32, #tpu.memory_space<vmem>>, %arg9: memref<8x128xf32, #tpu.memory_space<vmem>>) attributes {dimension_semantics = [#tpu.dimension_semantics<parallel>, #tpu.dimension_semantics<arbitrary>], iteration_bounds = array<i64: 1, 1>, scalar_prefetch = 0 : i64, scratch_operands = 2 : i64, tpu.core_type = #tpu.core_type<tc>, window_params = [{transform_indices = @transform_0, window_bounds = array<i64: 8, 384>}, {transform_indices = @transform_1, window_bounds = array<i64: 384, 128>}, {pipeline_mode = #tpu.pipeline_mode<synchronous>, transform_indices = @transform_2, window_bounds = array<i64: 1, 128>}, {pipeline_mode = #tpu.pipeline_mode<synchronous>, transform_indices = @transform_3, window_bounds = array<i64: 128, 128>}, {pipeline_mode = #tpu.pipeline_mode<synchronous>, transform_indices = @transform_4, window_bounds = array<i64: 1, 128>}, {transform_indices = @transform_5, window_bounds = array<i64: 8, 128>}]} {
    %c0_i32 = arith.constant 0 : i32
    %0 = arith.cmpi eq, %arg1, %c0_i32 : i32
    %1 = arith.extui %0 : i1 to i32
    %c0_i32_0 = arith.constant 0 : i32
    %2 = arith.cmpi ne, %1, %c0_i32_0 : i32
    scf.if %2 {
      %cst_12 = arith.constant 0.000000e+00 : f32
      %15 = vector.broadcast %cst_12 : f32 to vector<8x128xf32>
      %c0_13 = arith.constant 0 : index
      %c0_14 = arith.constant 0 : index
      %16 = vector.load %arg8[%c0_13, %c0_14] : memref<8x128xf32, #tpu.memory_space<vmem>>, vector<8x128xf32>
      tpu.vector_store %arg8[%c0_13, %c0_14], %15 {strides = array<i32>} : memref<8x128xf32, #tpu.memory_space<vmem>>, vector<8x128xf32>,
    } else {
    }
    %c0 = arith.constant 0 : index
    %c0_1 = arith.constant 0 : index
    %3 = vector.load %arg8[%c0, %c0_1] : memref<8x128xf32, #tpu.memory_space<vmem>>, vector<8x128xf32>
    %c0_2 = arith.constant 0 : index
    %c0_3 = arith.constant 0 : index
    %4 = vector.load %arg2[%c0_2, %c0_3] : memref<8x384xbf16, #tpu.memory_space<vmem>>, vector<8x384xbf16>
    %c0_4 = arith.constant 0 : index
    %c0_5 = arith.constant 0 : index
    %5 = vector.load %arg3[%c0_4, %c0_5] : memref<384x128xbf16, #tpu.memory_space<vmem>>, vector<384x128xbf16>
    %cst = arith.constant dense<0.000000e+00> : vector<8x128xf32>
    %6 = tpu.matmul %4, %5, %cst {dimension_numbers = #tpu.dot_dimension_numbers<[1], [0], [0], [1], [0, 0, 1, 1], [], []>} : vector<8x384xbf16>, vector<384x128xbf16>, vector<8x128xf32> -> vector<8x128xf32>
    %7 = arith.addf %3, %6 : vector<8x128xf32>
    %c0_6 = arith.constant 0 : index
    %c0_7 = arith.constant 0 : index
    %8 = vector.load %arg8[%c0_6, %c0_7] : memref<8x128xf32, #tpu.memory_space<vmem>>, vector<8x128xf32>
    tpu.vector_store %arg8[%c0_6, %c0_7], %7 {strides = array<i32>} : memref<8x128xf32, #tpu.memory_space<vmem>>, vector<8x128xf32>,
    %c0_i32_8 = arith.constant 0 : i32
    %9 = arith.cmpi eq, %arg1, %c0_i32_8 : i32
    %10 = arith.extui %9 : i1 to i32
    %c0_i32_9 = arith.constant 0 : i32
    %11 = arith.cmpi ne, %10, %c0_i32_9 : i32
    scf.if %11 {
      %c0_12 = arith.constant 0 : index
      %c128 = arith.constant 128 : index
      %15 = vector.load %arg2[%c0_12, %c128] : memref<8x384xbf16, #tpu.memory_space<vmem>>, vector<8x128xbf16>
      %16 = arith.extf %15 : vector<8x128xbf16> to vector<8x128xf32>
      %c0_13 = arith.constant 0 : index
      %c0_14 = arith.constant 0 : index
      %17 = vector.load %arg9[%c0_13, %c0_14] : memref<8x128xf32, #tpu.memory_space<vmem>>, vector<8x128xf32>
      tpu.vector_store %arg9[%c0_13, %c0_14], %16 {strides = array<i32>} : memref<8x128xf32, #tpu.memory_space<vmem>>, vector<8x128xf32>,
    } else {
    }
    %c0_i32_10 = arith.constant 0 : i32
    %12 = arith.cmpi eq, %arg1, %c0_i32_10 : i32
    %13 = arith.extui %12 : i1 to i32
    %c0_i32_11 = arith.constant 0 : i32
    %14 = arith.cmpi ne, %13, %c0_i32_11 : i32
    scf.if %14 {
      %c0_12 = arith.constant 0 : index
      %c0_13 = arith.constant 0 : index
      %15 = vector.load %arg8[%c0_12, %c0_13] : memref<8x128xf32, #tpu.memory_space<vmem>>, vector<8x128xf32>
      %c0_14 = arith.constant 0 : index
      %c0_15 = arith.constant 0 : index
      %16 = vector.load %arg4[%c0_14, %c0_15] : memref<1x128xf32, #tpu.memory_space<vmem>>, vector<1x128xf32>
      %17 = vector.broadcast %16 : vector<1x128xf32> to vector<8x128xf32>
      %18 = arith.addf %15, %17 : vector<8x128xf32>
      %cst_16 = arith.constant 0.000000e+00 : f32
      %19 = vector.broadcast %cst_16 : f32 to vector<8x128xf32>
      %20 = arith.maximumf %18, %19 : vector<8x128xf32>
      %21 = arith.truncf %20 : vector<8x128xf32> to vector<8x128xbf16>
      %c0_17 = arith.constant 0 : index
      %c0_18 = arith.constant 0 : index
      %22 = vector.load %arg5[%c0_17, %c0_18] : memref<128x128xbf16, #tpu.memory_space<vmem>>, vector<128x128xbf16>
      %cst_19 = arith.constant dense<0.000000e+00> : vector<8x128xf32>
      %23 = tpu.matmul %21, %22, %cst_19 {dimension_numbers = #tpu.dot_dimension_numbers<[1], [0], [0], [1], [0, 0, 1, 1], [], []>} : vector<8x128xbf16>, vector<128x128xbf16>, vector<8x128xf32> -> vector<8x128xf32>
      %c0_20 = arith.constant 0 : index
      %c0_21 = arith.constant 0 : index
      %24 = vector.load %arg6[%c0_20, %c0_21] : memref<1x128xf32, #tpu.memory_space<vmem>>, vector<1x128xf32>
      %25 = vector.broadcast %24 : vector<1x128xf32> to vector<8x128xf32>
      %26 = arith.addf %23, %25 : vector<8x128xf32>
      %cst_22 = arith.constant 0.000000e+00 : f32
      %27 = vector.broadcast %cst_22 : f32 to vector<8x128xf32>
      %28 = arith.maximumf %26, %27 : vector<8x128xf32>
      %c0_23 = arith.constant 0 : index
      %c0_24 = arith.constant 0 : index
      %29 = vector.load %arg9[%c0_23, %c0_24] : memref<8x128xf32, #tpu.memory_space<vmem>>, vector<8x128xf32>
      %30 = arith.addf %28, %29 : vector<8x128xf32>
      %31 = arith.truncf %30 : vector<8x128xf32> to vector<8x128xbf16>
      %c0_25 = arith.constant 0 : index
      %c0_26 = arith.constant 0 : index
      %32 = vector.load %arg7[%c0_25, %c0_26] : memref<8x128xbf16, #tpu.memory_space<vmem>>, vector<8x128xbf16>
      tpu.vector_store %arg7[%c0_25, %c0_26], %31 {strides = array<i32>} : memref<8x128xbf16, #tpu.memory_space<vmem>>, vector<8x128xbf16>,
    } else {
    }
    return
  }
  func.func @transform_0(%arg0: i32, %arg1: i32) -> (i32, i32) {
    %c0_i32 = arith.constant 0 : i32
    return %arg0, %arg1 : i32, i32
  }
  func.func @transform_1(%arg0: i32, %arg1: i32) -> (i32, i32) {
    %c0_i32 = arith.constant 0 : i32
    %c0_i32_0 = arith.constant 0 : i32
    return %arg1, %c0_i32 : i32, i32
  }
  func.func @transform_2(%arg0: i32, %arg1: i32) -> (i32, i32) {
    %c0_i32 = arith.constant 0 : i32
    %c0_i32_0 = arith.constant 0 : i32
    %c0_i32_1 = arith.constant 0 : i32
    return %c0_i32, %c0_i32_0 : i32, i32
  }
  func.func @transform_3(%arg0: i32, %arg1: i32) -> (i32, i32) {
    %c0_i32 = arith.constant 0 : i32
    %c0_i32_0 = arith.constant 0 : i32
    %c0_i32_1 = arith.constant 0 : i32
    return %c0_i32, %c0_i32_0 : i32, i32
  }
  func.func @transform_4(%arg0: i32, %arg1: i32) -> (i32, i32) {
    %c0_i32 = arith.constant 0 : i32
    %c0_i32_0 = arith.constant 0 : i32
    %c0_i32_1 = arith.constant 0 : i32
    return %c0_i32, %c0_i32_0 : i32, i32
  }
  func.func @transform_5(%arg0: i32, %arg1: i32) -> (i32, i32) {
    %c0_i32 = arith.constant 0 : i32
    %c0_i32_0 = arith.constant 0 : i32
    return %arg0, %c0_i32 : i32, i32
  }
}

module attributes {stable_mosaic.version = 11 : i64} {
  func.func @_matmul_bias_act_kernel(%arg0: i32, %arg1: i32, %arg2: memref<8x128xbf16, #tpu.memory_space<vmem>>, %arg3: memref<128x128xbf16, #tpu.memory_space<vmem>>, %arg4: memref<1x128xf32, #tpu.memory_space<vmem>>, %arg5: memref<8x128xf32, #tpu.memory_space<vmem>>, %arg6: memref<8x128xf32, #tpu.memory_space<vmem>>) attributes {dimension_semantics = [#tpu.dimension_semantics<parallel>, #tpu.dimension_semantics<arbitrary>], iteration_bounds = array<i64: 1, 1>, scalar_prefetch = 0 : i64, scratch_operands = 1 : i64, tpu.core_type = #tpu.core_type<tc>, window_params = [{transform_indices = @transform_0, window_bounds = array<i64: 8, 128>}, {transform_indices = @transform_1, window_bounds = array<i64: 128, 128>}, {pipeline_mode = #tpu.pipeline_mode<synchronous>, transform_indices = @transform_2, window_bounds = array<i64: 1, 128>}, {transform_indices = @transform_3, window_bounds = array<i64: 8, 128>}]} {
    %c0_i32 = arith.constant 0 : i32
    %0 = arith.cmpi eq, %arg1, %c0_i32 : i32
    %1 = arith.extui %0 : i1 to i32
    %c0_i32_0 = arith.constant 0 : i32
    %2 = arith.cmpi ne, %1, %c0_i32_0 : i32
    scf.if %2 {
      %cst_10 = arith.constant 0.000000e+00 : f32
      %12 = vector.broadcast %cst_10 : f32 to vector<8x128xf32>
      %c0_11 = arith.constant 0 : index
      %c0_12 = arith.constant 0 : index
      %13 = vector.load %arg6[%c0_11, %c0_12] : memref<8x128xf32, #tpu.memory_space<vmem>>, vector<8x128xf32>
      tpu.vector_store %arg6[%c0_11, %c0_12], %12 {strides = array<i32>} : memref<8x128xf32, #tpu.memory_space<vmem>>, vector<8x128xf32>,
    } else {
    }
    %c0 = arith.constant 0 : index
    %c0_1 = arith.constant 0 : index
    %3 = vector.load %arg6[%c0, %c0_1] : memref<8x128xf32, #tpu.memory_space<vmem>>, vector<8x128xf32>
    %c0_2 = arith.constant 0 : index
    %c0_3 = arith.constant 0 : index
    %4 = vector.load %arg2[%c0_2, %c0_3] : memref<8x128xbf16, #tpu.memory_space<vmem>>, vector<8x128xbf16>
    %c0_4 = arith.constant 0 : index
    %c0_5 = arith.constant 0 : index
    %5 = vector.load %arg3[%c0_4, %c0_5] : memref<128x128xbf16, #tpu.memory_space<vmem>>, vector<128x128xbf16>
    %cst = arith.constant dense<0.000000e+00> : vector<8x128xf32>
    %6 = tpu.matmul %4, %5, %cst {dimension_numbers = #tpu.dot_dimension_numbers<[1], [0], [0], [1], [0, 0, 1, 1], [], []>} : vector<8x128xbf16>, vector<128x128xbf16>, vector<8x128xf32> -> vector<8x128xf32>
    %7 = arith.addf %3, %6 : vector<8x128xf32>
    %c0_6 = arith.constant 0 : index
    %c0_7 = arith.constant 0 : index
    %8 = vector.load %arg6[%c0_6, %c0_7] : memref<8x128xf32, #tpu.memory_space<vmem>>, vector<8x128xf32>
    tpu.vector_store %arg6[%c0_6, %c0_7], %7 {strides = array<i32>} : memref<8x128xf32, #tpu.memory_space<vmem>>, vector<8x128xf32>,
    %c0_i32_8 = arith.constant 0 : i32
    %9 = arith.cmpi eq, %arg1, %c0_i32_8 : i32
    %10 = arith.extui %9 : i1 to i32
    %c0_i32_9 = arith.constant 0 : i32
    %11 = arith.cmpi ne, %10, %c0_i32_9 : i32
    scf.if %11 {
      %c0_10 = arith.constant 0 : index
      %c0_11 = arith.constant 0 : index
      %12 = vector.load %arg6[%c0_10, %c0_11] : memref<8x128xf32, #tpu.memory_space<vmem>>, vector<8x128xf32>
      %c0_12 = arith.constant 0 : index
      %c0_13 = arith.constant 0 : index
      %13 = vector.load %arg4[%c0_12, %c0_13] : memref<1x128xf32, #tpu.memory_space<vmem>>, vector<1x128xf32>
      %14 = vector.broadcast %13 : vector<1x128xf32> to vector<8x128xf32>
      %15 = arith.addf %12, %14 : vector<8x128xf32>
      %c0_14 = arith.constant 0 : index
      %c0_15 = arith.constant 0 : index
      %16 = vector.load %arg5[%c0_14, %c0_15] : memref<8x128xf32, #tpu.memory_space<vmem>>, vector<8x128xf32>
      tpu.vector_store %arg5[%c0_14, %c0_15], %15 {strides = array<i32>} : memref<8x128xf32, #tpu.memory_space<vmem>>, vector<8x128xf32>,
    } else {
    }
    return
  }
  func.func @transform_0(%arg0: i32, %arg1: i32) -> (i32, i32) {
    %c0_i32 = arith.constant 0 : i32
    return %arg0, %arg1 : i32, i32
  }
  func.func @transform_1(%arg0: i32, %arg1: i32) -> (i32, i32) {
    %c0_i32 = arith.constant 0 : i32
    %c0_i32_0 = arith.constant 0 : i32
    return %arg1, %c0_i32 : i32, i32
  }
  func.func @transform_2(%arg0: i32, %arg1: i32) -> (i32, i32) {
    %c0_i32 = arith.constant 0 : i32
    %c0_i32_0 = arith.constant 0 : i32
    %c0_i32_1 = arith.constant 0 : i32
    return %c0_i32, %c0_i32_0 : i32, i32
  }
  func.func @transform_3(%arg0: i32, %arg1: i32) -> (i32, i32) {
    %c0_i32 = arith.constant 0 : i32
    %c0_i32_0 = arith.constant 0 : i32
    return %arg0, %c0_i32 : i32, i32
  }
}

</mosaic_0001>

<llo_original>
// kernel: pallas_forward.3
$region0: #{pallas_forward.3}
  #allocation0 [shape = 'u32[]', space=smem, size = 0x4, offset = 0x4, fixed_abs, tag = 'smem constant byte address 0x4 - core index']
  #allocation1 [shape = 'u32[144,128]{1,0:T(1,128)}', space=vmem, size = 0x12000, scoped, tag = 'internal scratch']
  #allocation2 [shape = 'f32[8,128]{1,0:T(8,128)}', space=vmem, size = 0x1000, scoped, tag = 'scratch operand']
  %s0 = inlined_call_operand.vmem [shape: bf16[8,128], index: 0, kind: input, shape index: {}]
  %s1 = inlined_call_operand.vmem [shape: bf16[128,128], index: 1, kind: input, shape index: {}]
  %s2 = inlined_call_operand.vmem [shape: f32[1,128], index: 2, kind: input, shape index: {}]
  %s3 = inlined_call_operand.vmem [shape: bf16[8,128], index: 3, kind: output, shape index: {}]
  %s4 = sld [smem:[#allocation0]]
  $region30: #{pallas_forward.3} parent=0
    _
  %s6 = ssub.s32 1, %s4
  %s7 = scalar_select 0, %s6, %s4
  // Predicated region
  $region2: #{pallas_forward.3} parent=0 // pred_check
    _
  $region3: #{pallas_forward.3} parent=0 // pred_check_branch
    %9 = sbr.rel (0) target = $region5
  $region4: #{pallas_forward.3} parent=0 // pred_region
    _
  $region5: #{pallas_forward.3} parent=0 // pred_fallthru
    _
  // Predicated region
  $region6: #{pallas_forward.3} parent=0 // pred_check
    _
  $region7: #{pallas_forward.3} parent=0 // pred_check_branch
    %11 = sbr.rel (0) target = $region9
  $region8: #{pallas_forward.3} parent=0 // pred_region
    _
  $region9: #{pallas_forward.3} parent=0 // pred_fallthru
    _
  // Predicated region
  $region10: #{pallas_forward.3} parent=0 // pred_check
    _
  $region11: #{pallas_forward.3} parent=0 // pred_check_branch
    %13 = sbr.rel (0) target = $region13
  $region12: #{pallas_forward.3} parent=0 // pred_region
    _
  $region13: #{pallas_forward.3} parent=0 // pred_fallthru
    _
  %p15 = scmp.eq.s32.totalorder 0, 0
  // Predicated region
  $region14: #{pallas_forward.3} parent=0 // pred_check
    %p16 = pneg %p15
  $region15: #{pallas_forward.3} parent=0 // pred_check_branch
    %18 = sbr.rel (%p16) target = $region17
  $region16: #{pallas_forward.3} parent=0 // pred_region
    %19 = vst [vmem:[#allocation2] sm:$0xff] 0.0
  $region17: #{pallas_forward.3} parent=0 // pred_fallthru
    _
  %v20 = vld [vmem:[#allocation2] sm:$0xff]
  %v21 = vld [vmem:[%s0] sm:$0xf]
  %v22 = vld [vmem:[%s1] sm:$0xf]
  %v23 = vld [vmem:[%s1 + $0x4] sm:$0xf]
  %v24 = vld [vmem:[%s1 + $0x8] sm:$0xf]
  %v25 = vld [vmem:[%s1 + $0xc] sm:$0xf]
  %v26 = vld [vmem:[%s1 + $0x10] sm:$0xf]
  %v27 = vld [vmem:[%s1 + $0x14] sm:$0xf]
  %v28 = vld [vmem:[%s1 + $0x18] sm:$0xf]
  %v29 = vld [vmem:[%s1 + $0x1c] sm:$0xf]
  %v30 = vld [vmem:[%s1 + $0x20] sm:$0xf]
  %v31 = vld [vmem:[%s1 + $0x24] sm:$0xf]
  %v32 = vld [vmem:[%s1 + $0x28] sm:$0xf]
  %v33 = vld [vmem:[%s1 + $0x2c] sm:$0xf]
  %v34 = vld [vmem:[%s1 + $0x30] sm:$0xf]
  %v35 = vld [vmem:[%s1 + $0x34] sm:$0xf]
  %v36 = vld [vmem:[%s1 + $0x38] sm:$0xf]
  %v37 = vld [vmem:[%s1 + $0x3c] sm:$0xf]
  %v54 = vunpack.c.l.b16 %v22
  %v55 = vunpack.c.l.b16 %v23
  %v56 = vunpack.c.l.b16 %v24
  %v57 = vunpack.c.l.b16 %v25
  %v58 = vunpack.c.l.b16 %v26
  %v59 = vunpack.c.l.b16 %v27
  %v60 = vunpack.c.l.b16 %v28
  %v61 = vunpack.c.l.b16 %v29
  %v62 = vunpack.c.l.b16 %v30
  %v63 = vunpack.c.l.b16 %v31
  %v64 = vunpack.c.l.b16 %v32
  %v65 = vunpack.c.l.b16 %v33
  %v66 = vunpack.c.l.b16 %v34
  %v67 = vunpack.c.l.b16 %v35
  %v68 = vunpack.c.l.b16 %v36
  %v69 = vunpack.c.l.b16 %v37
  %v70 = vpack.c.b16 %v55, %v54
  %v71 = vpack.c.b16 %v57, %v56
  %v72 = vpack.c.b16 %v59, %v58
  %v73 = vpack.c.b16 %v61, %v60
  %v74 = vpack.c.b16 %v63, %v62
  %v75 = vpack.c.b16 %v65, %v64
  %v76 = vpack.c.b16 %v67, %v66
  %v77 = vpack.c.b16 %v69, %v68
  %86 = vmatprep.subr.bf16.mxu0 0
  %87 = vmatpush1.bf16.msra.mxu0 %v77
  %88 = vmatprep.subr.bf16.mxu0 0
  %89 = vmatpush1.bf16.msra.mxu0 %v76
  %90 = vmatprep.subr.bf16.mxu0 0
  %91 = vmatpush1.bf16.msra.mxu0 %v75
  %92 = vmatprep.subr.bf16.mxu0 0
  %93 = vmatpush1.bf16.msra.mxu0 %v74
  %94 = vmatprep.subr.bf16.mxu0 0
  %95 = vmatpush1.bf16.msra.mxu0 %v73
  %96 = vmatprep.subr.bf16.mxu0 0
  %97 = vmatpush1.bf16.msra.mxu0 %v72
  %98 = vmatprep.subr.bf16.mxu0 0
  %99 = vmatpush1.bf16.msra.mxu0 %v71
  %100 = vmatprep.subr.bf16.mxu0 0
  %101 = vmatpush1.bf16.msra.mxu0 %v70
  %102 = vmatprep.subr.bf16.mxu0 0
  %103 = vmatpush2.bf16.msra.mxu0 0
  %104 = vmatprep.subr.bf16.mxu0 0
  %105 = vmatpush2.bf16.msra.mxu0 0
  %106 = vmatprep.subr.bf16.mxu0 0
  %107 = vmatpush2.bf16.msra.mxu0 0
  %108 = vmatprep.subr.bf16.mxu0 0
  %109 = vmatpush2.bf16.msra.mxu0 0
  %110 = vmatprep.subr.bf16.mxu0 0
  %111 = vmatpush2.bf16.msra.mxu0 0
  %112 = vmatprep.subr.bf16.mxu0 0
  %113 = vmatpush2.bf16.msra.mxu0 0
  %114 = vmatprep.subr.bf16.mxu0 0
  %115 = vmatpush2.bf16.msra.mxu0 0
  %116 = vmatprep.subr.bf16.mxu0 0
  %117 = vmatpush2.bf16.msra.mxu0 0
  %118 = vmatprep.mubr.bf16.mxu0 0
  %119 = vmatmul.mubr.bf16.gmra.mxu0 %v21
  %v120 = vpop.f32.mrf.mxu0
  %v121 = vadd.f32 0.0, %v120
  %v122 = vpop.f32.mrf.mxu0
  %v123 = vpop.f32.mrf.mxu0
  %v124 = vpop.f32.mrf.mxu0
  %125 = vdwg.mxu0
  %v126 = vadd.f32 %v20, %v121
  %127 = vst [vmem:[#allocation2] sm:$0xff] %v126
  // Predicated region
  $region18: #{pallas_forward.3} parent=0 // pred_check
    %p128 = pneg %p15
  $region19: #{pallas_forward.3} parent=0 // pred_check_branch
    %130 = sbr.rel (%p128) target = $region21
  $region20: #{pallas_forward.3} parent=0 // pred_region
    %v131 = vld [vmem:[#allocation2] sm:$0xff]
    %v132 = vld [vmem:[%s2] sm:$0x1]
    %v134 = vlaneseq
    %v135 = vshrl.u32 %v134, 7
    %v136 = vsub.s32 0, %v135
    %v137 = vrot.slane %v132, %v136
    %v139 = vadd.f32 %v131, %v137
    %v140 = vmax.f32 %v139, 0.0
    %v141 = vpack.c.bf16 %v140, %v140
    %142 = vst [vmem:[%s3] sm:$0xf] %v141
  $region21: #{pallas_forward.3} parent=0 // pred_fallthru
    _
  // Predicated region
  $region22: #{pallas_forward.3} parent=0 // pred_check
    _
  $region23: #{pallas_forward.3} parent=0 // pred_check_branch
    %144 = sbr.rel (0) target = $region25
  $region24: #{pallas_forward.3} parent=0 // pred_region
    _
  $region25: #{pallas_forward.3} parent=0 // pred_fallthru
    _
  // Predicated region
  $region26: #{pallas_forward.3} parent=0 // pred_check
    _
  $region27: #{pallas_forward.3} parent=0 // pred_check_branch
    %146 = sbr.rel (0) target = $region29
  $region28: #{pallas_forward.3} parent=0 // pred_region
    _
  $region29: #{pallas_forward.3} parent=0 // pred_fallthru
    _

// kernel: pallas_forward.5
$region0: #{pallas_forward.5}
  #allocation0 [shape = 'u32[]', space=smem, size = 0x4, offset = 0x4, fixed_abs, tag = 'smem constant byte address 0x4 - core index']
  #allocation1 [shape = 'u32[144,128]{1,0:T(1,128)}', space=vmem, size = 0x12000, scoped, tag = 'internal scratch']
  #allocation2 [shape = 'f32[8,128]{1,0:T(8,128)}', space=vmem, size = 0x1000, scoped, tag = 'scratch operand']
  %s0 = inlined_call_operand.vmem [shape: bf16[8,128], index: 0, kind: input, shape index: {}]
  %s1 = inlined_call_operand.vmem [shape: bf16[128,128], index: 1, kind: input, shape index: {}]
  %s2 = inlined_call_operand.vmem [shape: f32[1,128], index: 2, kind: input, shape index: {}]
  %s3 = inlined_call_operand.vmem [shape: f32[8,128], index: 3, kind: output, shape index: {}]
  %s4 = sld [smem:[#allocation0]]
  $region30: #{pallas_forward.5} parent=0
    _
  %s6 = ssub.s32 1, %s4
  %s7 = scalar_select 0, %s6, %s4
  // Predicated region
  $region2: #{pallas_forward.5} parent=0 // pred_check
    _
  $region3: #{pallas_forward.5} parent=0 // pred_check_branch
    %9 = sbr.rel (0) target = $region5
  $region4: #{pallas_forward.5} parent=0 // pred_region
    _
  $region5: #{pallas_forward.5} parent=0 // pred_fallthru
    _
  // Predicated region
  $region6: #{pallas_forward.5} parent=0 // pred_check
    _
  $region7: #{pallas_forward.5} parent=0 // pred_check_branch
    %11 = sbr.rel (0) target = $region9
  $region8: #{pallas_forward.5} parent=0 // pred_region
    _
  $region9: #{pallas_forward.5} parent=0 // pred_fallthru
    _
  // Predicated region
  $region10: #{pallas_forward.5} parent=0 // pred_check
    _
  $region11: #{pallas_forward.5} parent=0 // pred_check_branch
    %13 = sbr.rel (0) target = $region13
  $region12: #{pallas_forward.5} parent=0 // pred_region
    _
  $region13: #{pallas_forward.5} parent=0 // pred_fallthru
    _
  %p15 = scmp.eq.s32.totalorder 0, 0
  // Predicated region
  $region14: #{pallas_forward.5} parent=0 // pred_check
    %p16 = pneg %p15
  $region15: #{pallas_forward.5} parent=0 // pred_check_branch
    %18 = sbr.rel (%p16) target = $region17
  $region16: #{pallas_forward.5} parent=0 // pred_region
    %19 = vst [vmem:[#allocation2] sm:$0xff] 0.0
  $region17: #{pallas_forward.5} parent=0 // pred_fallthru
    _
  %v20 = vld [vmem:[#allocation2] sm:$0xff]
  %v21 = vld [vmem:[%s0] sm:$0xf]
  %v22 = vld [vmem:[%s1] sm:$0xf]
  %v23 = vld [vmem:[%s1 + $0x4] sm:$0xf]
  %v24 = vld [vmem:[%s1 + $0x8] sm:$0xf]
  %v25 = vld [vmem:[%s1 + $0xc] sm:$0xf]
  %v26 = vld [vmem:[%s1 + $0x10] sm:$0xf]
  %v27 = vld [vmem:[%s1 + $0x14] sm:$0xf]
  %v28 = vld [vmem:[%s1 + $0x18] sm:$0xf]
  %v29 = vld [vmem:[%s1 + $0x1c] sm:$0xf]
  %v30 = vld [vmem:[%s1 + $0x20] sm:$0xf]
  %v31 = vld [vmem:[%s1 + $0x24] sm:$0xf]
  %v32 = vld [vmem:[%s1 + $0x28] sm:$0xf]
  %v33 = vld [vmem:[%s1 + $0x2c] sm:$0xf]
  %v34 = vld [vmem:[%s1 + $0x30] sm:$0xf]
  %v35 = vld [vmem:[%s1 + $0x34] sm:$0xf]
  %v36 = vld [vmem:[%s1 + $0x38] sm:$0xf]
  %v37 = vld [vmem:[%s1 + $0x3c] sm:$0xf]
  %v54 = vunpack.c.l.b16 %v22
  %v55 = vunpack.c.l.b16 %v23
  %v56 = vunpack.c.l.b16 %v24
  %v57 = vunpack.c.l.b16 %v25
  %v58 = vunpack.c.l.b16 %v26
  %v59 = vunpack.c.l.b16 %v27
  %v60 = vunpack.c.l.b16 %v28
  %v61 = vunpack.c.l.b16 %v29
  %v62 = vunpack.c.l.b16 %v30
  %v63 = vunpack.c.l.b16 %v31
  %v64 = vunpack.c.l.b16 %v32
  %v65 = vunpack.c.l.b16 %v33
  %v66 = vunpack.c.l.b16 %v34
  %v67 = vunpack.c.l.b16 %v35
  %v68 = vunpack.c.l.b16 %v36
  %v69 = vunpack.c.l.b16 %v37
  %v70 = vpack.c.b16 %v55, %v54
  %v71 = vpack.c.b16 %v57, %v56
  %v72 = vpack.c.b16 %v59, %v58
  %v73 = vpack.c.b16 %v61, %v60
  %v74 = vpack.c.b16 %v63, %v62
  %v75 = vpack.c.b16 %v65, %v64
  %v76 = vpack.c.b16 %v67, %v66
  %v77 = vpack.c.b16 %v69, %v68
  %86 = vmatprep.subr.bf16.mxu0 0
  %87 = vmatpush1.bf16.msra.mxu0 %v77
  %88 = vmatprep.subr.bf16.mxu0 0
  %89 = vmatpush1.bf16.msra.mxu0 %v76
  %90 = vmatprep.subr.bf16.mxu0 0
  %91 = vmatpush1.bf16.msra.mxu0 %v75
  %92 = vmatprep.subr.bf16.mxu0 0
  %93 = vmatpush1.bf16.msra.mxu0 %v74
  %94 = vmatprep.subr.bf16.mxu0 0
  %95 = vmatpush1.bf16.msra.mxu0 %v73
  %96 = vmatprep.subr.bf16.mxu0 0
  %97 = vmatpush1.bf16.msra.mxu0 %v72
  %98 = vmatprep.subr.bf16.mxu0 0
  %99 = vmatpush1.bf16.msra.mxu0 %v71
  %100 = vmatprep.subr.bf16.mxu0 0
  %101 = vmatpush1.bf16.msra.mxu0 %v70
  %102 = vmatprep.subr.bf16.mxu0 0
  %103 = vmatpush2.bf16.msra.mxu0 0
  %104 = vmatprep.subr.bf16.mxu0 0
  %105 = vmatpush2.bf16.msra.mxu0 0
  %106 = vmatprep.subr.bf16.mxu0 0
  %107 = vmatpush2.bf16.msra.mxu0 0
  %108 = vmatprep.subr.bf16.mxu0 0
  %109 = vmatpush2.bf16.msra.mxu0 0
  %110 = vmatprep.subr.bf16.mxu0 0
  %111 = vmatpush2.bf16.msra.mxu0 0
  %112 = vmatprep.subr.bf16.mxu0 0
  %113 = vmatpush2.bf16.msra.mxu0 0
  %114 = vmatprep.subr.bf16.mxu0 0
  %115 = vmatpush2.bf16.msra.mxu0 0
  %116 = vmatprep.subr.bf16.mxu0 0
  %117 = vmatpush2.bf16.msra.mxu0 0
  %118 = vmatprep.mubr.bf16.mxu0 0
  %119 = vmatmul.mubr.bf16.gmra.mxu0 %v21
  %v120 = vpop.f32.mrf.mxu0
  %v121 = vadd.f32 0.0, %v120
  %v122 = vpop.f32.mrf.mxu0
  %v123 = vpop.f32.mrf.mxu0
  %v124 = vpop.f32.mrf.mxu0
  %125 = vdwg.mxu0
  %v126 = vadd.f32 %v20, %v121
  %127 = vst [vmem:[#allocation2] sm:$0xff] %v126
  // Predicated region
  $region18: #{pallas_forward.5} parent=0 // pred_check
    %p128 = pneg %p15
  $region19: #{pallas_forward.5} parent=0 // pred_check_branch
    %130 = sbr.rel (%p128) target = $region21
  $region20: #{pallas_forward.5} parent=0 // pred_region
    %v131 = vld [vmem:[#allocation2] sm:$0xff]
    %v132 = vld [vmem:[%s2] sm:$0x1]
    %v134 = vlaneseq
    %v135 = vshrl.u32 %v134, 7
    %v136 = vsub.s32 0, %v135
    %v137 = vrot.slane %v132, %v136
    %v139 = vadd.f32 %v131, %v137
    %140 = vst [vmem:[%s3] sm:$0xff] %v139
  $region21: #{pallas_forward.5} parent=0 // pred_fallthru
    _
  // Predicated region
  $region22: #{pallas_forward.5} parent=0 // pred_check
    _
  $region23: #{pallas_forward.5} parent=0 // pred_check_branch
    %142 = sbr.rel (0) target = $region25
  $region24: #{pallas_forward.5} parent=0 // pred_region
    _
  $region25: #{pallas_forward.5} parent=0 // pred_fallthru
    _
  // Predicated region
  $region26: #{pallas_forward.5} parent=0 // pred_check
    _
  $region27: #{pallas_forward.5} parent=0 // pred_check_branch
    %144 = sbr.rel (0) target = $region29
  $region28: #{pallas_forward.5} parent=0 // pred_region
    _
  $region29: #{pallas_forward.5} parent=0 // pred_fallthru
    _

// kernel: pallas_forward.4
$region0: #{pallas_forward.4}
  #allocation0 [shape = 'u32[]', space=smem, size = 0x4, offset = 0x4, fixed_abs, tag = 'smem constant byte address 0x4 - core index']
  #allocation1 [shape = 'u32[144,128]{1,0:T(1,128)}', space=vmem, size = 0x12000, scoped, tag = 'internal scratch']
  #allocation2 [shape = 'f32[8,128]{1,0:T(8,128)}', space=vmem, size = 0x1000, scoped, tag = 'scratch operand']
  #allocation3 [shape = 'f32[8,128]{1,0:T(8,128)}', space=vmem, size = 0x1000, scoped, tag = 'scratch operand']
  %s0 = inlined_call_operand.vmem [shape: bf16[8,384], index: 0, kind: input, shape index: {}]
  %s1 = inlined_call_operand.vmem [shape: bf16[384,128], index: 1, kind: input, shape index: {}]
  %s2 = inlined_call_operand.vmem [shape: f32[1,128], index: 2, kind: input, shape index: {}]
  %s3 = inlined_call_operand.vmem [shape: bf16[128,128], index: 3, kind: input, shape index: {}]
  %s4 = inlined_call_operand.vmem [shape: f32[1,128], index: 4, kind: input, shape index: {}]
  %s5 = inlined_call_operand.vmem [shape: bf16[8,128], index: 5, kind: output, shape index: {}]
  %s6 = sld [smem:[#allocation0]]
  $region38: #{pallas_forward.4} parent=0
    _
  %s8 = ssub.s32 1, %s6
  %s9 = scalar_select 0, %s8, %s6
  // Predicated region
  $region2: #{pallas_forward.4} parent=0 // pred_check
    _
  $region3: #{pallas_forward.4} parent=0 // pred_check_branch
    %11 = sbr.rel (0) target = $region5
  $region4: #{pallas_forward.4} parent=0 // pred_region
    _
  $region5: #{pallas_forward.4} parent=0 // pred_fallthru
    _
  // Predicated region
  $region6: #{pallas_forward.4} parent=0 // pred_check
    _
  $region7: #{pallas_forward.4} parent=0 // pred_check_branch
    %13 = sbr.rel (0) target = $region9
  $region8: #{pallas_forward.4} parent=0 // pred_region
    _
  $region9: #{pallas_forward.4} parent=0 // pred_fallthru
    _
  // Predicated region
  $region10: #{pallas_forward.4} parent=0 // pred_check
    _
  $region11: #{pallas_forward.4} parent=0 // pred_check_branch
    %15 = sbr.rel (0) target = $region13
  $region12: #{pallas_forward.4} parent=0 // pred_region
    _
  $region13: #{pallas_forward.4} parent=0 // pred_fallthru
    _
  // Predicated region
  $region14: #{pallas_forward.4} parent=0 // pred_check
    _
  $region15: #{pallas_forward.4} parent=0 // pred_check_branch
    %17 = sbr.rel (0) target = $region17
  $region16: #{pallas_forward.4} parent=0 // pred_region
    _
  $region17: #{pallas_forward.4} parent=0 // pred_fallthru
    _
  // Predicated region
  $region18: #{pallas_forward.4} parent=0 // pred_check
    _
  $region19: #{pallas_forward.4} parent=0 // pred_check_branch
    %19 = sbr.rel (0) target = $region21
  $region20: #{pallas_forward.4} parent=0 // pred_region
    _
  $region21: #{pallas_forward.4} parent=0 // pred_fallthru
    _
  %p21 = scmp.eq.s32.totalorder 0, 0
  // Predicated region
  $region22: #{pallas_forward.4} parent=0 // pred_check
    %p22 = pneg %p21
  $region23: #{pallas_forward.4} parent=0 // pred_check_branch
    %24 = sbr.rel (%p22) target = $region25
  $region24: #{pallas_forward.4} parent=0 // pred_region
    %25 = vst [vmem:[#allocation2] sm:$0xff] 0.0
  $region25: #{pallas_forward.4} parent=0 // pred_fallthru
    _
  %v26 = vld [vmem:[#allocation2] sm:$0xff]
  %v27 = vld [vmem:[%s0] sm:$0xff]
  %v28 = vld [vmem:[%s0 + $0x8] sm:$0xf]
  %v29 = vld [vmem:[%s1] sm:$0xf]
  %v30 = vld [vmem:[%s1 + $0x4] sm:$0xf]
  %v31 = vld [vmem:[%s1 + $0x8] sm:$0xf]
  %v32 = vld [vmem:[%s1 + $0xc] sm:$0xf]
  %v33 = vld [vmem:[%s1 + $0x10] sm:$0xf]
  %v34 = vld [vmem:[%s1 + $0x14] sm:$0xf]
  %v35 = vld [vmem:[%s1 + $0x18] sm:$0xf]
  %v36 = vld [vmem:[%s1 + $0x1c] sm:$0xf]
  %v37 = vld [vmem:[%s1 + $0x20] sm:$0xf]
  %v38 = vld [vmem:[%s1 + $0x24] sm:$0xf]
  %v39 = vld [vmem:[%s1 + $0x28] sm:$0xf]
  %v40 = vld [vmem:[%s1 + $0x2c] sm:$0xf]
  %v41 = vld [vmem:[%s1 + $0x30] sm:$0xf]
  %v42 = vld [vmem:[%s1 + $0x34] sm:$0xf]
  %v43 = vld [vmem:[%s1 + $0x38] sm:$0xf]
  %v44 = vld [vmem:[%s1 + $0x3c] sm:$0xf]
  %v45 = vld [vmem:[%s1 + $0x40] sm:$0xf]
  %v46 = vld [vmem:[%s1 + $0x44] sm:$0xf]
  %v47 = vld [vmem:[%s1 + $0x48] sm:$0xf]
  %v48 = vld [vmem:[%s1 + $0x4c] sm:$0xf]
  %v49 = vld [vmem:[%s1 + $0x50] sm:$0xf]
  %v50 = vld [vmem:[%s1 + $0x54] sm:$0xf]
  %v51 = vld [vmem:[%s1 + $0x58] sm:$0xf]
  %v52 = vld [vmem:[%s1 + $0x5c] sm:$0xf]
  %v53 = vld [vmem:[%s1 + $0x60] sm:$0xf]
  %v54 = vld [vmem:[%s1 + $0x64] sm:$0xf]
  %v55 = vld [vmem:[%s1 + $0x68] sm:$0xf]
  %v56 = vld [vmem:[%s1 + $0x6c] sm:$0xf]
  %v57 = vld [vmem:[%s1 + $0x70] sm:$0xf]
  %v58 = vld [vmem:[%s1 + $0x74] sm:$0xf]
  %v59 = vld [vmem:[%s1 + $0x78] sm:$0xf]
  %v60 = vld [vmem:[%s1 + $0x7c] sm:$0xf]
  %v61 = vld [vmem:[%s1 + $0x80] sm:$0xf]
  %v62 = vld [vmem:[%s1 + $0x84] sm:$0xf]
  %v63 = vld [vmem:[%s1 + $0x88] sm:$0xf]
  %v64 = vld [vmem:[%s1 + $0x8c] sm:$0xf]
  %v65 = vld [vmem:[%s1 + $0x90] sm:$0xf]
  %v66 = vld [vmem:[%s1 + $0x94] sm:$0xf]
  %v67 = vld [vmem:[%s1 + $0x98] sm:$0xf]
  %v68 = vld [vmem:[%s1 + $0x9c] sm:$0xf]
  %v69 = vld [vmem:[%s1 + $0xa0] sm:$0xf]
  %v70 = vld [vmem:[%s1 + $0xa4] sm:$0xf]
  %v71 = vld [vmem:[%s1 + $0xa8] sm:$0xf]
  %v72 = vld [vmem:[%s1 + $0xac] sm:$0xf]
  %v73 = vld [vmem:[%s1 + $0xb0] sm:$0xf]
  %v74 = vld [vmem:[%s1 + $0xb4] sm:$0xf]
  %v75 = vld [vmem:[%s1 + $0xb8] sm:$0xf]
  %v76 = vld [vmem:[%s1 + $0xbc] sm:$0xf]
  %v79 = vunpack.c.l.b16 %v27
  %v80 = vunpack.c.h.b16 %v27
  %v81 = vunpack.c.l.b16 %v28
  %v82 = vpack.c.b16 %v79, %v79
  %v83 = vpack.c.b16 %v80, %v80
  %v84 = vpack.c.b16 %v81, %v81
  %v136 = vunpack.c.l.b16 %v29
  %v137 = vunpack.c.l.b16 %v30
  %v138 = vunpack.c.l.b16 %v31
  %v139 = vunpack.c.l.b16 %v32
  %v140 = vunpack.c.l.b16 %v33
  %v141 = vunpack.c.l.b16 %v34
  %v142 = vunpack.c.l.b16 %v35
  %v143 = vunpack.c.l.b16 %v36
  %v144 = vunpack.c.l.b16 %v37
  %v145 = vunpack.c.l.b16 %v38
  %v146 = vunpack.c.l.b16 %v39
  %v147 = vunpack.c.l.b16 %v40
  %v148 = vunpack.c.l.b16 %v41
  %v149 = vunpack.c.l.b16 %v42
  %v150 = vunpack.c.l.b16 %v43
  %v151 = vunpack.c.l.b16 %v44
  %v152 = vunpack.c.l.b16 %v45
  %v153 = vunpack.c.l.b16 %v46
  %v154 = vunpack.c.l.b16 %v47
  %v155 = vunpack.c.l.b16 %v48
  %v156 = vunpack.c.l.b16 %v49
  %v157 = vunpack.c.l.b16 %v50
  %v158 = vunpack.c.l.b16 %v51
  %v159 = vunpack.c.l.b16 %v52
  %v160 = vunpack.c.l.b16 %v53
  %v161 = vunpack.c.l.b16 %v54
  %v162 = vunpack.c.l.b16 %v55
  %v163 = vunpack.c.l.b16 %v56
  %v164 = vunpack.c.l.b16 %v57
  %v165 = vunpack.c.l.b16 %v58
  %v166 = vunpack.c.l.b16 %v59
  %v167 = vunpack.c.l.b16 %v60
  %v168 = vunpack.c.l.b16 %v61
  %v169 = vunpack.c.l.b16 %v62
  %v170 = vunpack.c.l.b16 %v63
  %v171 = vunpack.c.l.b16 %v64
  %v172 = vunpack.c.l.b16 %v65
  %v173 = vunpack.c.l.b16 %v66
  %v174 = vunpack.c.l.b16 %v67
  %v175 = vunpack.c.l.b16 %v68
  %v176 = vunpack.c.l.b16 %v69
  %v177 = vunpack.c.l.b16 %v70
  %v178 = vunpack.c.l.b16 %v71
  %v179 = vunpack.c.l.b16 %v72
  %v180 = vunpack.c.l.b16 %v73
  %v181 = vunpack.c.l.b16 %v74
  %v182 = vunpack.c.l.b16 %v75
  %v183 = vunpack.c.l.b16 %v76
  %v184 = vpack.c.b16 %v137, %v136
  %v185 = vpack.c.b16 %v139, %v138
  %v186 = vpack.c.b16 %v141, %v140
  %v187 = vpack.c.b16 %v143, %v142
  %v188 = vpack.c.b16 %v145, %v144
  %v189 = vpack.c.b16 %v147, %v146
  %v190 = vpack.c.b16 %v149, %v148
  %v191 = vpack.c.b16 %v151, %v150
  %v192 = vpack.c.b16 %v153, %v152
  %v193 = vpack.c.b16 %v155, %v154
  %v194 = vpack.c.b16 %v157, %v156
  %v195 = vpack.c.b16 %v159, %v158
  %v196 = vpack.c.b16 %v161, %v160
  %v197 = vpack.c.b16 %v163, %v162
  %v198 = vpack.c.b16 %v165, %v164
  %v199 = vpack.c.b16 %v167, %v166
  %v200 = vpack.c.b16 %v169, %v168
  %v201 = vpack.c.b16 %v171, %v170
  %v202 = vpack.c.b16 %v173, %v172
  %v203 = vpack.c.b16 %v175, %v174
  %v204 = vpack.c.b16 %v177, %v176
  %v205 = vpack.c.b16 %v179, %v178
  %v206 = vpack.c.b16 %v181, %v180
  %v207 = vpack.c.b16 %v183, %v182
  %232 = vmatprep.subr.bf16.mxu0 0
  %233 = vmatpush1.bf16.msra.mxu0 %v191
  %234 = vmatprep.subr.bf16.mxu0 0
  %235 = vmatpush1.bf16.msra.mxu0 %v190
  %236 = vmatprep.subr.bf16.mxu0 0
  %237 = vmatpush1.bf16.msra.mxu0 %v189
  %238 = vmatprep.subr.bf16.mxu0 0
  %239 = vmatpush1.bf16.msra.mxu0 %v188
  %240 = vmatprep.subr.bf16.mxu0 0
  %241 = vmatpush1.bf16.msra.mxu0 %v187
  %242 = vmatprep.subr.bf16.mxu0 0
  %243 = vmatpush1.bf16.msra.mxu0 %v186
  %244 = vmatprep.subr.bf16.mxu0 0
  %245 = vmatpush1.bf16.msra.mxu0 %v185
  %246 = vmatprep.subr.bf16.mxu0 0
  %247 = vmatpush1.bf16.msra.mxu0 %v184
  %248 = vmatprep.subr.bf16.mxu0 0
  %249 = vmatpush2.bf16.msra.mxu0 %v199
  %250 = vmatprep.subr.bf16.mxu0 0
  %251 = vmatpush2.bf16.msra.mxu0 %v198
  %252 = vmatprep.subr.bf16.mxu0 0
  %253 = vmatpush2.bf16.msra.mxu0 %v197
  %254 = vmatprep.subr.bf16.mxu0 0
  %255 = vmatpush2.bf16.msra.mxu0 %v196
  %256 = vmatprep.subr.bf16.mxu0 0
  %257 = vmatpush2.bf16.msra.mxu0 %v195
  %258 = vmatprep.subr.bf16.mxu0 0
  %259 = vmatpush2.bf16.msra.mxu0 %v194
  %260 = vmatprep.subr.bf16.mxu0 0
  %261 = vmatpush2.bf16.msra.mxu0 %v193
  %262 = vmatprep.subr.bf16.mxu0 0
  %263 = vmatpush2.bf16.msra.mxu0 %v192
  %264 = vmatprep.mubr.bf16.mxu0 %v83
  %265 = vmatmul.mubr.bf16.gmra.mxu0 %v82
  %v266 = vpop.f32.mrf.mxu0
  %v267 = vadd.f32 0.0, %v266
  %v268 = vpop.f32.mrf.mxu0
  %v269 = vpop.f32.mrf.mxu0
  %v270 = vpop.f32.mrf.mxu0
  %271 = vdwg.mxu0
  %272 = vmatprep.subr.bf16.mxu0 0
  %273 = vmatpush1.bf16.msra.mxu0 %v207
  %274 = vmatprep.subr.bf16.mxu0 0
  %275 = vmatpush1.bf16.msra.mxu0 %v206
  %276 = vmatprep.subr.bf16.mxu0 0
  %277 = vmatpush1.bf16.msra.mxu0 %v205
  %278 = vmatprep.subr.bf16.mxu0 0
  %279 = vmatpush1.bf16.msra.mxu0 %v204
  %280 = vmatprep.subr.bf16.mxu0 0
  %281 = vmatpush1.bf16.msra.mxu0 %v203
  %282 = vmatprep.subr.bf16.mxu0 0
  %283 = vmatpush1.bf16.msra.mxu0 %v202
  %284 = vmatprep.subr.bf16.mxu0 0
  %285 = vmatpush1.bf16.msra.mxu0 %v201
  %286 = vmatprep.subr.bf16.mxu0 0
  %287 = vmatpush1.bf16.msra.mxu0 %v200
  %288 = vmatprep.subr.bf16.mxu0 0
  %289 = vmatpush2.bf16.msra.mxu0 0
  %290 = vmatprep.subr.bf16.mxu0 0
  %291 = vmatpush2.bf16.msra.mxu0 0
  %292 = vmatprep.subr.bf16.mxu0 0
  %293 = vmatpush2.bf16.msra.mxu0 0
  %294 = vmatprep.subr.bf16.mxu0 0
  %295 = vmatpush2.bf16.msra.mxu0 0
  %296 = vmatprep.subr.bf16.mxu0 0
  %297 = vmatpush2.bf16.msra.mxu0 0
  %298 = vmatprep.subr.bf16.mxu0 0
  %299 = vmatpush2.bf16.msra.mxu0 0
  %300 = vmatprep.subr.bf16.mxu0 0
  %301 = vmatpush2.bf16.msra.mxu0 0
  %302 = vmatprep.subr.bf16.mxu0 0
  %303 = vmatpush2.bf16.msra.mxu0 0
  %304 = vmatprep.mubr.bf16.mxu0 0
  %305 = vmatmul.mubr.bf16.gmra.mxu0 %v84
  %v306 = vpop.f32.mrf.mxu0
  %v307 = vadd.f32 %v267, %v306
  %v308 = vpop.f32.mrf.mxu0
  %v309 = vpop.f32.mrf.mxu0
  %v310 = vpop.f32.mrf.mxu0
  %311 = vdwg.mxu0
  %v312 = vadd.f32 %v26, %v307
  %313 = vst [vmem:[#allocation2] sm:$0xff] %v312
  // Predicated region
  $region26: #{pallas_forward.4} parent=0 // pred_check
    %p314 = pneg %p21
  $region27: #{pallas_forward.4} parent=0 // pred_check_branch
    %316 = sbr.rel (%p314) target = $region29
  $region28: #{pallas_forward.4} parent=0 // pred_region
    %v317 = vld [vmem:[%s0 + $0x4] sm:$0xf]
    %v318 = vunpack.c.l.bf16 %v317
    %319 = vst [vmem:[#allocation3] sm:$0xff] %v318
    %v320 = vld [vmem:[#allocation2] sm:$0xff]
    %v321 = vld [vmem:[%s2] sm:$0x1]
    %v323 = vlaneseq
    %v324 = vshrl.u32 %v323, 7
    %v325 = vsub.s32 0, %v324
    %v326 = vrot.slane %v321, %v325
    %v328 = vadd.f32 %v320, %v326
    %v329 = vmax.f32 %v328, 0.0
    %v330 = vpack.c.bf16 %v329, %v329
    %v331 = vld [vmem:[%s3] sm:$0xf]
    %v332 = vld [vmem:[%s3 + $0x4] sm:$0xf]
    %v333 = vld [vmem:[%s3 + $0x8] sm:$0xf]
    %v334 = vld [vmem:[%s3 + $0xc] sm:$0xf]
    %v335 = vld [vmem:[%s3 + $0x10] sm:$0xf]
    %v336 = vld [vmem:[%s3 + $0x14] sm:$0xf]
    %v337 = vld [vmem:[%s3 + $0x18] sm:$0xf]
    %v338 = vld [vmem:[%s3 + $0x1c] sm:$0xf]
    %v339 = vld [vmem:[%s3 + $0x20] sm:$0xf]
    %v340 = vld [vmem:[%s3 + $0x24] sm:$0xf]
    %v341 = vld [vmem:[%s3 + $0x28] sm:$0xf]
    %v342 = vld [vmem:[%s3 + $0x2c] sm:$0xf]
    %v343 = vld [vmem:[%s3 + $0x30] sm:$0xf]
    %v344 = vld [vmem:[%s3 + $0x34] sm:$0xf]
    %v345 = vld [vmem:[%s3 + $0x38] sm:$0xf]
    %v346 = vld [vmem:[%s3 + $0x3c] sm:$0xf]
    %v347 = vld [vmem:[%s4] sm:$0x1]
    %v349 = vlaneseq
    %v350 = vshrl.u32 %v349, 7
    %v351 = vsub.s32 0, %v350
    %v352 = vrot.slane %v347, %v351
    %v370 = vunpack.c.l.b16 %v331
    %v371 = vunpack.c.l.b16 %v332
    %v372 = vunpack.c.l.b16 %v333
    %v373 = vunpack.c.l.b16 %v334
    %v374 = vunpack.c.l.b16 %v335
    %v375 = vunpack.c.l.b16 %v336
    %v376 = vunpack.c.l.b16 %v337
    %v377 = vunpack.c.l.b16 %v338
    %v378 = vunpack.c.l.b16 %v339
    %v379 = vunpack.c.l.b16 %v340
    %v380 = vunpack.c.l.b16 %v341
    %v381 = vunpack.c.l.b16 %v342
    %v382 = vunpack.c.l.b16 %v343
    %v383 = vunpack.c.l.b16 %v344
    %v384 = vunpack.c.l.b16 %v345
    %v385 = vunpack.c.l.b16 %v346
    %v386 = vpack.c.b16 %v371, %v370
    %v387 = vpack.c.b16 %v373, %v372
    %v388 = vpack.c.b16 %v375, %v374
    %v389 = vpack.c.b16 %v377, %v376
    %v390 = vpack.c.b16 %v379, %v378
    %v391 = vpack.c.b16 %v381, %v380
    %v392 = vpack.c.b16 %v383, %v382
    %v393 = vpack.c.b16 %v385, %v384
    %402 = vmatprep.subr.bf16.mxu0 0
    %403 = vmatpush1.bf16.msra.mxu0 %v393
    %404 = vmatprep.subr.bf16.mxu0 0
    %405 = vmatpush1.bf16.msra.mxu0 %v392
    %406 = vmatprep.subr.bf16.mxu0 0
    %407 = vmatpush1.bf16.msra.mxu0 %v391
    %408 = vmatprep.subr.bf16.mxu0 0
    %409 = vmatpush1.bf16.msra.mxu0 %v390
    %410 = vmatprep.subr.bf16.mxu0 0
    %411 = vmatpush1.bf16.msra.mxu0 %v389
    %412 = vmatprep.subr.bf16.mxu0 0
    %413 = vmatpush1.bf16.msra.mxu0 %v388
    %414 = vmatprep.subr.bf16.mxu0 0
    %415 = vmatpush1.bf16.msra.mxu0 %v387
    %416 = vmatprep.subr.bf16.mxu0 0
    %417 = vmatpush1.bf16.msra.mxu0 %v386
    %418 = vmatprep.subr.bf16.mxu0 0
    %419 = vmatpush2.bf16.msra.mxu0 0
    %420 = vmatprep.subr.bf16.mxu0 0
    %421 = vmatpush2.bf16.msra.mxu0 0
    %422 = vmatprep.subr.bf16.mxu0 0
    %423 = vmatpush2.bf16.msra.mxu0 0
    %424 = vmatprep.subr.bf16.mxu0 0
    %425 = vmatpush2.bf16.msra.mxu0 0
    %426 = vmatprep.subr.bf16.mxu0 0
    %427 = vmatpush2.bf16.msra.mxu0 0
    %428 = vmatprep.subr.bf16.mxu0 0
    %429 = vmatpush2.bf16.msra.mxu0 0
    %430 = vmatprep.subr.bf16.mxu0 0
    %431 = vmatpush2.bf16.msra.mxu0 0
    %432 = vmatprep.subr.bf16.mxu0 0
    %433 = vmatpush2.bf16.msra.mxu0 0
    %434 = vmatprep.mubr.bf16.mxu0 0
    %435 = vmatmul.mubr.bf16.gmra.mxu0 %v330
    %v436 = vpop.f32.mrf.mxu0
    %v437 = vadd.f32 %v352, %v436
    %v438 = vpop.f32.mrf.mxu0
    %v439 = vpop.f32.mrf.mxu0
    %v440 = vpop.f32.mrf.mxu0
    %441 = vdwg.mxu0
    %v442 = vmax.f32 %v437, 0.0
    %v443 = vld [vmem:[#allocation3] sm:$0xff]
    %v444 = vadd.f32 %v442, %v443
    %v445 = vpack.c.bf16 %v444, %v444
    %446 = vst [vmem:[%s5] sm:$0xf] %v445
  $region29: #{pallas_forward.4} parent=0 // pred_fallthru
    _
  // Predicated region
  $region30: #{pallas_forward.4} parent=0 // pred_check
    _
  $region31: #{pallas_forward.4} parent=0 // pred_check_branch
    %448 = sbr.rel (0) target = $region33
  $region32: #{pallas_forward.4} parent=0 // pred_region
    _
  $region33: #{pallas_forward.4} parent=0 // pred_fallthru
    _
  // Predicated region
  $region34: #{pallas_forward.4} parent=0 // pred_check
    _
  $region35: #{pallas_forward.4} parent=0 // pred_check_branch
    %450 = sbr.rel (0) target = $region37
  $region36: #{pallas_forward.4} parent=0 // pred_region
    _
  $region37: #{pallas_forward.4} parent=0 // pred_fallthru
    _

</llo_original>
